<compile_context>
chip_gen: v5e
topology: v5e:2x2
jax: 0.10.0
libtpu: 0.0.40
codegen_flags: <defaults>
</compile_context>

<pallas_src>
import jax
import jax.numpy as jnp
from jax.experimental import pallas as pl
from jax.experimental.pallas import tpu as pltpu

LANES = 128
OUT_LANES = 2 * LANES  # two output channels interleaved per input lane


def _round_up(a, b):
    return ((a + b - 1) // b) * b


def _netg_kernel(x_ref, m_ref, b_ref, o_ref):
    # x_ref: (block_rows, 128) f32   -- lane-dense input slab
    # m_ref: (128, 256)        f32   -- interleave/scale matrix (resident)
    # b_ref: (1, 256)          f32   -- interleaved bias vector (resident)
    # o_ref: (block_rows, 256) f32   -- torch-layout output slab (lane dense)
    o_ref[...] = (
        jnp.dot(
            x_ref[...],
            m_ref[...],
            preferred_element_type=jnp.float32,
            precision=jax.lax.Precision.HIGHEST,  # keep f32 Linear numerics
        )
        + b_ref[...]
    )


def _pick_block_rows(rows, requested):
    if requested is None:
        # Aim for >= 2 grid steps (v7x has 2 TensorCores) but cap the tile at
        # 2048 rows so double-buffered VMEM stays ~6 MiB on every generation.
        br = min(2048, _round_up(pl.cdiv(rows, 2), 8))
    else:
        br = requested
    br = max(1, min(br, rows))
    # Mosaic (8, 128) rule: second-minor block dim must be a multiple of 8
    # unless it spans the full array dimension.
    if br != rows and br % 8 != 0:
        br = min(_round_up(br, 8), rows)
    return br


def netg_forward(x, weight, bias, *, block_rows=None):
    """NetG forward: x (N, 1) f32, weight (2, 1) f32, bias (2,) f32 -> (N, 2)."""
    x_flat = x.reshape(-1).astype(jnp.float32)
    n = x_flat.shape[0]

    # Lane-dense layout: rows of 128 lanes.  Keep at least 8 rows so every
    # block is a clean (>=8, 128) MXU/VPU tile; pad only when actually needed.
    rows = max(pl.cdiv(n, LANES), 8)
    n_pad = rows * LANES
    if n_pad != n:
        x_flat = jnp.pad(x_flat, (0, n_pad - n))
    x2d = x_flat.reshape(rows, LANES)

    block_rows = _pick_block_rows(rows, block_rows)
    grid = (pl.cdiv(rows, block_rows),)

    # Interleave/scale matrix: m[k, 2k + c] = w_c, zeros elsewhere.
    w = weight.reshape(2).astype(jnp.float32)             # [w0, w1]
    eye = jnp.eye(LANES, dtype=jnp.float32)                # (128, 128)
    m = (eye[:, :, None] * w[None, None, :]).reshape(LANES, OUT_LANES)
    # Interleaved bias: [b0, b1, b0, b1, ...]
    bvec = jnp.tile(bias.reshape(2).astype(jnp.float32), LANES).reshape(1, OUT_LANES)

    flops = 2 * rows * LANES * OUT_LANES + rows * OUT_LANES
    bytes_accessed = 4 * (rows * LANES + rows * OUT_LANES + LANES * OUT_LANES + OUT_LANES)

    out = pl.pallas_call(
        _netg_kernel,
        out_shape=jax.ShapeDtypeStruct((rows, OUT_LANES), jnp.float32),
        grid=grid,
        in_specs=[
            pl.BlockSpec((block_rows, LANES), lambda i: (i, 0)),
            pl.BlockSpec((LANES, OUT_LANES), lambda i: (0, 0)),   # resident
            pl.BlockSpec((1, OUT_LANES), lambda i: (0, 0)),       # resident
        ],
        out_specs=pl.BlockSpec((block_rows, OUT_LANES), lambda i: (i, 0)),
        compiler_params=pltpu.CompilerParams(
            dimension_semantics=("parallel",),
        ),
        cost_estimate=pl.CostEstimate(
            flops=flops, transcendentals=0, bytes_accessed=bytes_accessed
        ),
    )(x2d, m, bvec)

    # (rows, 256) -> (rows*128, 2) is a free metadata reshape; row g holds
    # [w0*x[g] + b0, w1*x[g] + b1] -- exactly torch's nn.Linear output layout.
    out2 = out.reshape(rows * LANES, 2)
    if n_pad != n:
        out2 = out2[:n]
    return out2


if __name__ == "__main__":
    # Deterministic parameters exactly as NetG.weight_init():
    #   weight = [[3.0], [-1.0]]  (out_features=2, in_features=1)
    #   bias   = [-4.0, 3.0]
    weight = jnp.array([[3.0], [-1.0]], dtype=jnp.float32)
    bias = jnp.array([-4.0, 3.0], dtype=jnp.float32)

    k1, k2, k3 = jax.random.split(jax.random.PRNGKey(0), 3)

    def reference(x):
        # Elementwise f32 reference (avoids XLA matmul precision ambiguity):
        # x @ W.T + b  ==  x * W.T + b  for in_features == 1.
        return x * weight.T + bias

    # 1) Small batch, same shape the PyTorch module sees: (N, 1).  Pad path.
    x_small = jax.random.normal(k1, (8, 1), dtype=jnp.float32)
    out_small = jax.block_until_ready(netg_forward(x_small, weight, bias))
    assert out_small.shape == (8, 2)
    assert jnp.allclose(out_small, reference(x_small), atol=1e-5, rtol=1e-5)

    # 2) Lane-aligned batch (no pad, multi-step grid with default block size).
    x_med = jax.random.normal(k2, (2048, 1), dtype=jnp.float32)
    out_med = jax.block_until_ready(netg_forward(x_med, weight, bias))
    assert out_med.shape == (2048, 2)
    assert jnp.allclose(out_med, reference(x_med), atol=1e-5, rtol=1e-5)

    # 3) Ragged batch + explicit small block (pad, partial tail, grid > 1).
    x_odd = jax.random.normal(k3, (2000, 1), dtype=jnp.float32)
    out_odd = jax.block_until_ready(
        netg_forward(x_odd, weight, bias, block_rows=8)
    )
    assert out_odd.shape == (2000, 2)
    assert jnp.allclose(out_odd, reference(x_odd), atol=1e-5, rtol=1e-5)

    print("KERNEL_OK")
</pallas_src>

<mosaic_0001>
module attributes {stable_mosaic.version = 11 : i64} {
  func.func @_netg_kernel(%arg0: i32, %arg1: memref<8x128xf32, #tpu.memory_space<vmem>>, %arg2: memref<128x256xf32, #tpu.memory_space<vmem>>, %arg3: memref<1x256xf32, #tpu.memory_space<vmem>>, %arg4: memref<8x256xf32, #tpu.memory_space<vmem>>) attributes {dimension_semantics = [#tpu.dimension_semantics<parallel>], iteration_bounds = array<i64: 1>, scalar_prefetch = 0 : i64, scratch_operands = 0 : i64, tpu.core_type = #tpu.core_type<tc>, window_params = [{transform_indices = @transform_0, window_bounds = array<i64: 8, 128>}, {pipeline_mode = #tpu.pipeline_mode<synchronous>, transform_indices = @transform_1, window_bounds = array<i64: 128, 256>}, {pipeline_mode = #tpu.pipeline_mode<synchronous>, transform_indices = @transform_2, window_bounds = array<i64: 1, 256>}, {transform_indices = @transform_3, window_bounds = array<i64: 8, 256>}]} {
    %c0 = arith.constant 0 : index
    %c0_0 = arith.constant 0 : index
    %0 = vector.load %arg1[%c0, %c0_0] : memref<8x128xf32, #tpu.memory_space<vmem>>, vector<8x128xf32>
    %c0_1 = arith.constant 0 : index
    %c0_2 = arith.constant 0 : index
    %1 = vector.load %arg2[%c0_1, %c0_2] : memref<128x256xf32, #tpu.memory_space<vmem>>, vector<128x256xf32>
    %cst = arith.constant dense<0.000000e+00> : vector<8x256xf32>
    %2 = tpu.matmul %0, %1, %cst {dimension_numbers = #tpu.dot_dimension_numbers<[1], [0], [0], [1], [0, 0, 1, 1], [], []>, precision = #tpu.contract_precision<fp32>} : vector<8x128xf32>, vector<128x256xf32>, vector<8x256xf32> -> vector<8x256xf32>
    %c0_3 = arith.constant 0 : index
    %c0_4 = arith.constant 0 : index
    %3 = vector.load %arg3[%c0_3, %c0_4] : memref<1x256xf32, #tpu.memory_space<vmem>>, vector<1x256xf32>
    %4 = vector.broadcast %3 : vector<1x256xf32> to vector<8x256xf32>
    %5 = arith.addf %2, %4 : vector<8x256xf32>
    %c0_5 = arith.constant 0 : index
    %c0_6 = arith.constant 0 : index
    %6 = vector.load %arg4[%c0_5, %c0_6] : memref<8x256xf32, #tpu.memory_space<vmem>>, vector<8x256xf32>
    tpu.vector_store %arg4[%c0_5, %c0_6], %5 {strides = array<i32>} : memref<8x256xf32, #tpu.memory_space<vmem>>, vector<8x256xf32>,
    return
  }
  func.func @transform_0(%arg0: i32) -> (i32, i32) {
    %c0_i32 = arith.constant 0 : i32
    %c0_i32_0 = arith.constant 0 : i32
    return %arg0, %c0_i32 : i32, i32
  }
  func.func @transform_1(%arg0: i32) -> (i32, i32) {
    %c0_i32 = arith.constant 0 : i32
    %c0_i32_0 = arith.constant 0 : i32
    %c0_i32_1 = arith.constant 0 : i32
    return %c0_i32, %c0_i32_0 : i32, i32
  }
  func.func @transform_2(%arg0: i32) -> (i32, i32) {
    %c0_i32 = arith.constant 0 : i32
    %c0_i32_0 = arith.constant 0 : i32
    %c0_i32_1 = arith.constant 0 : i32
    return %c0_i32, %c0_i32_0 : i32, i32
  }
  func.func @transform_3(%arg0: i32) -> (i32, i32) {
    %c0_i32 = arith.constant 0 : i32
    %c0_i32_0 = arith.constant 0 : i32
    return %arg0, %c0_i32 : i32, i32
  }
}

</mosaic_0001>

<llo_original>
// kernel: tpu_custom_call.1
$region0: #{tpu_custom_call.1}
  #allocation0 [shape = 'u32[]', space=smem, size = 0x4, offset = 0x4, fixed_abs, tag = 'smem constant byte address 0x4 - core index']
  #allocation1 [shape = 'u32[72,128]{1,0:T(1,128)}', space=vmem, size = 0x9000, scoped, tag = 'internal scratch']
  %s0 = inlined_call_operand.hbm [shape: f32[8,128], index: 0, kind: input, shape index: {}]
  %s1 = inlined_call_operand.hbm [shape: f32[128,256], index: 1, kind: input, shape index: {}]
  %s2 = inlined_call_operand.hbm [shape: f32[1,256], index: 2, kind: input, shape index: {}]
  %s3 = inlined_call_operand.hbm [shape: f32[8,256], index: 3, kind: output, shape index: {}]
  %s4 = sld [smem:[#allocation0]]
  $region34: #{tpu_custom_call.1} parent=0
    _
  %s6 = ssub.s32 1, %s4
  %s7 = scalar_select 0, %s6, %s4
  $region1: #{tpu_custom_call.1} parent=0
    #allocation2 [shape = 'u8[4096]{0}', space=vmem, size = 0x1000, scoped, tag = 'input window, operand 0, single buffered']
    #allocation3 [shape = 's32[1]{0}', space=sflag, size = 0x4, scoped, tag = 'scoped memory for tpu_custom_call.1']
    #allocation4 [shape = 's32[1]{0}', space=sflag, size = 0x4, scoped, tag = 'scoped memory for tpu_custom_call.1']
    #allocation5 [shape = 'u8[131072]{0}', space=vmem, size = 0x20000, scoped, tag = 'input window, operand 1, single buffered']
    #allocation6 [shape = 's32[1]{0}', space=sflag, size = 0x4, scoped, tag = 'scoped memory for tpu_custom_call.1']
    #allocation7 [shape = 'u8[1024]{0}', space=vmem, size = 0x400, scoped, tag = 'input window, operand 2, single buffered']
    #allocation8 [shape = 'u8[8192]{0}', space=vmem, size = 0x2000, scoped, tag = 'output window, operand 0, single buffered']
    %8 = vsyncpa [#allocation3], 0
    %9 = vsyncpa [#allocation6], 0
    %10 = vsyncpa [#allocation4], 0
    // Predicated region
    $region2: #{tpu_custom_call.1} parent=1 // pred_check
      _
    $region3: #{tpu_custom_call.1} parent=1 // pred_check_branch
      %12 = sbr.rel (0) target = $region5
    $region4: #{tpu_custom_call.1} parent=1 // pred_region
      %14 = vsyncadd [#allocation3], 0
      %s16 = sshll.u32 %s0, 4
      %s17 = int_to_ptr.hbm [resolvable:$true] %s16
      %s18 = sshll.u32 [#allocation2], 4
      %s19 = int_to_ptr.vmem [resolvable:$true] %s18
      %21 = dma.hbm_to_vmem [thread:$0]  %s17, 128, %s19, [#allocation3]
    $region5: #{tpu_custom_call.1} parent=1 // pred_fallthru
      _
    // Predicated region
    $region6: #{tpu_custom_call.1} parent=1 // pred_check
      _
    $region7: #{tpu_custom_call.1} parent=1 // pred_check_branch
      %23 = sbr.rel (0) target = $region9
    $region8: #{tpu_custom_call.1} parent=1 // pred_region
      %25 = vsyncadd [#allocation6], 0
      %s26 = sshll.u32 %s1, 4
      %s27 = int_to_ptr.hbm [resolvable:$true] %s26
      %s28 = sshll.u32 [#allocation5], 4
      %s29 = int_to_ptr.vmem [resolvable:$true] %s28
      %34 = dma.hbm_to_vmem [thread:$0]  %s27, 4096, %s29, [#allocation6], 256, 256, 16
    $region9: #{tpu_custom_call.1} parent=1 // pred_fallthru
      _
    // Predicated region
    $region10: #{tpu_custom_call.1} parent=1 // pred_check
      _
    $region11: #{tpu_custom_call.1} parent=1 // pred_check_branch
      %36 = sbr.rel (0) target = $region13
    $region12: #{tpu_custom_call.1} parent=1 // pred_region
      %38 = vsyncadd [#allocation6], 0
      %s40 = sshll.u32 %s2, 4
      %s41 = int_to_ptr.hbm [resolvable:$true] %s40
      %s42 = sshll.u32 [#allocation7], 4
      %s43 = int_to_ptr.vmem [resolvable:$true] %s42
      %45 = dma.hbm_to_vmem [thread:$0]  %s41, 32, %s43, [#allocation6]
    $region13: #{tpu_custom_call.1} parent=1 // pred_fallthru
      _
    // Predicated region
    $region14: #{tpu_custom_call.1} parent=1 // pred_check
      _
    $region15: #{tpu_custom_call.1} parent=1 // pred_check_branch
      %47 = sbr.rel (0) target = $region17
    $region16: #{tpu_custom_call.1} parent=1 // pred_region
      %49 = dma.done [#allocation3], 128
    $region17: #{tpu_custom_call.1} parent=1 // pred_fallthru
      _
    // Predicated region
    $region18: #{tpu_custom_call.1} parent=1 // pred_check
      _
    $region19: #{tpu_custom_call.1} parent=1 // pred_check_branch
      %51 = sbr.rel (0) target = $region21
    $region20: #{tpu_custom_call.1} parent=1 // pred_region
      %53 = dma.done [#allocation6], 4096
    $region21: #{tpu_custom_call.1} parent=1 // pred_fallthru
      _
    // Predicated region
    $region22: #{tpu_custom_call.1} parent=1 // pred_check
      _
    $region23: #{tpu_custom_call.1} parent=1 // pred_check_branch
      %55 = sbr.rel (0) target = $region25
    $region24: #{tpu_custom_call.1} parent=1 // pred_region
      %57 = dma.done [#allocation6], 32
    $region25: #{tpu_custom_call.1} parent=1 // pred_fallthru
      _
    %v58 = vld [vmem:[#allocation2] sm:$0xff]
    %v59 = vld [vmem:[#allocation5] sm:$0xff]
    %v60 = vld [vmem:[#allocation5 + $0x8] sm:$0xff]
    %v61 = vld [vmem:[#allocation5 + $0x10] sm:$0xff]
    %v62 = vld [vmem:[#allocation5 + $0x18] sm:$0xff]
    %v63 = vld [vmem:[#allocation5 + $0x20] sm:$0xff]
    %v64 = vld [vmem:[#allocation5 + $0x28] sm:$0xff]
    %v65 = vld [vmem:[#allocation5 + $0x30] sm:$0xff]
    %v66 = vld [vmem:[#allocation5 + $0x38] sm:$0xff]
    %v67 = vld [vmem:[#allocation5 + $0x40] sm:$0xff]
    %v68 = vld [vmem:[#allocation5 + $0x48] sm:$0xff]
    %v69 = vld [vmem:[#allocation5 + $0x50] sm:$0xff]
    %v70 = vld [vmem:[#allocation5 + $0x58] sm:$0xff]
    %v71 = vld [vmem:[#allocation5 + $0x60] sm:$0xff]
    %v72 = vld [vmem:[#allocation5 + $0x68] sm:$0xff]
    %v73 = vld [vmem:[#allocation5 + $0x70] sm:$0xff]
    %v74 = vld [vmem:[#allocation5 + $0x78] sm:$0xff]
    %v75 = vld [vmem:[#allocation5 + $0x80] sm:$0xff]
    %v76 = vld [vmem:[#allocation5 + $0x88] sm:$0xff]
    %v77 = vld [vmem:[#allocation5 + $0x90] sm:$0xff]
    %v78 = vld [vmem:[#allocation5 + $0x98] sm:$0xff]
    %v79 = vld [vmem:[#allocation5 + $0xa0] sm:$0xff]
    %v80 = vld [vmem:[#allocation5 + $0xa8] sm:$0xff]
    %v81 = vld [vmem:[#allocation5 + $0xb0] sm:$0xff]
    %v82 = vld [vmem:[#allocation5 + $0xb8] sm:$0xff]
    %v83 = vld [vmem:[#allocation5 + $0xc0] sm:$0xff]
    %v84 = vld [vmem:[#allocation5 + $0xc8] sm:$0xff]
    %v85 = vld [vmem:[#allocation5 + $0xd0] sm:$0xff]
    %v86 = vld [vmem:[#allocation5 + $0xd8] sm:$0xff]
    %v87 = vld [vmem:[#allocation5 + $0xe0] sm:$0xff]
    %v88 = vld [vmem:[#allocation5 + $0xe8] sm:$0xff]
    %v89 = vld [vmem:[#allocation5 + $0xf0] sm:$0xff]
    %v90 = vld [vmem:[#allocation5 + $0xf8] sm:$0xff]
    %v91 = vld [vmem:[#allocation7] sm:$0x3]
    %v93 = vperm.slane %v91, 0
    %v94 = vperm.slane %v91, 1
    %v97 = vand.u32 %v89, 4294901760
    %98 = vmatpush.msra.mxu0 %v97
    %v99 = vand.u32 %v87, 4294901760
    %100 = vmatpush.msra.mxu0 %v99
    %v101 = vand.u32 %v85, 4294901760
    %102 = vmatpush.msra.mxu0 %v101
    %v103 = vand.u32 %v83, 4294901760
    %104 = vmatpush.msra.mxu0 %v103
    %v105 = vand.u32 %v81, 4294901760
    %106 = vmatpush.msra.mxu0 %v105
    %v107 = vand.u32 %v79, 4294901760
    %108 = vmatpush.msra.mxu0 %v107
    %v109 = vand.u32 %v77, 4294901760
    %110 = vmatpush.msra.mxu0 %v109
    %v111 = vand.u32 %v75, 4294901760
    %112 = vmatpush.msra.mxu0 %v111
    %v113 = vand.u32 %v73, 4294901760
    %114 = vmatpush.msra.mxu0 %v113
    %v115 = vand.u32 %v71, 4294901760
    %116 = vmatpush.msra.mxu0 %v115
    %v117 = vand.u32 %v69, 4294901760
    %118 = vmatpush.msra.mxu0 %v117
    %v119 = vand.u32 %v67, 4294901760
    %120 = vmatpush.msra.mxu0 %v119
    %v121 = vand.u32 %v65, 4294901760
    %122 = vmatpush.msra.mxu0 %v121
    %v123 = vand.u32 %v63, 4294901760
    %124 = vmatpush.msra.mxu0 %v123
    %v125 = vand.u32 %v61, 4294901760
    %126 = vmatpush.msra.mxu0 %v125
    %v127 = vand.u32 %v59, 4294901760
    %128 = vmatpush.msra.mxu0 %v127
    %v129 = vand.u32 %v58, 4294901760
    %v130 = vsub.f32 %v58, %v129
    %v131 = vand.u32 %v130, 4294901760
    %v132 = vsub.f32 %v130, %v131
    %v133 = vand.u32 %v132, 4294901760
    %134 = vmatmul.f32.gmra.mxu0 %v133
    %v135 = vpop.f32.mrf.mxu0
    %v136 = vadd.f32 %v93, %v135
    %137 = vdwg.mxu0
    %v138 = vand.u32 %v89, 4294901760
    %v139 = vsub.f32 %v89, %v138
    %v140 = vand.u32 %v139, 4294901760
    %v141 = vsub.f32 %v139, %v140
    %v142 = vand.u32 %v141, 4294901760
    %143 = vmatpush.msra.mxu0 %v142
    %v144 = vand.u32 %v87, 4294901760
    %v145 = vsub.f32 %v87, %v144
    %v146 = vand.u32 %v145, 4294901760
    %v147 = vsub.f32 %v145, %v146
    %v148 = vand.u32 %v147, 4294901760
    %149 = vmatpush.msra.mxu0 %v148
    %v150 = vand.u32 %v85, 4294901760
    %v151 = vsub.f32 %v85, %v150
    %v152 = vand.u32 %v151, 4294901760
    %v153 = vsub.f32 %v151, %v152
    %v154 = vand.u32 %v153, 4294901760
    %155 = vmatpush.msra.mxu0 %v154
    %v156 = vand.u32 %v83, 4294901760
    %v157 = vsub.f32 %v83, %v156
    %v158 = vand.u32 %v157, 4294901760
    %v159 = vsub.f32 %v157, %v158
    %v160 = vand.u32 %v159, 4294901760
    %161 = vmatpush.msra.mxu0 %v160
    %v162 = vand.u32 %v81, 4294901760
    %v163 = vsub.f32 %v81, %v162
    %v164 = vand.u32 %v163, 4294901760
    %v165 = vsub.f32 %v163, %v164
    %v166 = vand.u32 %v165, 4294901760
    %167 = vmatpush.msra.mxu0 %v166
    %v168 = vand.u32 %v79, 4294901760
    %v169 = vsub.f32 %v79, %v168
    %v170 = vand.u32 %v169, 4294901760
    %v171 = vsub.f32 %v169, %v170
    %v172 = vand.u32 %v171, 4294901760
    %173 = vmatpush.msra.mxu0 %v172
    %v174 = vand.u32 %v77, 4294901760
    %v175 = vsub.f32 %v77, %v174
    %v176 = vand.u32 %v175, 4294901760
    %v177 = vsub.f32 %v175, %v176
    %v178 = vand.u32 %v177, 4294901760
    %179 = vmatpush.msra.mxu0 %v178
    %v180 = vand.u32 %v75, 4294901760
    %v181 = vsub.f32 %v75, %v180
    %v182 = vand.u32 %v181, 4294901760
    %v183 = vsub.f32 %v181, %v182
    %v184 = vand.u32 %v183, 4294901760
    %185 = vmatpush.msra.mxu0 %v184
    %v186 = vand.u32 %v73, 4294901760
    %v187 = vsub.f32 %v73, %v186
    %v188 = vand.u32 %v187, 4294901760
    %v189 = vsub.f32 %v187, %v188
    %v190 = vand.u32 %v189, 4294901760
    %191 = vmatpush.msra.mxu0 %v190
    %v192 = vand.u32 %v71, 4294901760
    %v193 = vsub.f32 %v71, %v192
    %v194 = vand.u32 %v193, 4294901760
    %v195 = vsub.f32 %v193, %v194
    %v196 = vand.u32 %v195, 4294901760
    %197 = vmatpush.msra.mxu0 %v196
    %v198 = vand.u32 %v69, 4294901760
    %v199 = vsub.f32 %v69, %v198
    %v200 = vand.u32 %v199, 4294901760
    %v201 = vsub.f32 %v199, %v200
    %v202 = vand.u32 %v201, 4294901760
    %203 = vmatpush.msra.mxu0 %v202
    %v204 = vand.u32 %v67, 4294901760
    %v205 = vsub.f32 %v67, %v204
    %v206 = vand.u32 %v205, 4294901760
    %v207 = vsub.f32 %v205, %v206
    %v208 = vand.u32 %v207, 4294901760
    %209 = vmatpush.msra.mxu0 %v208
    %v210 = vand.u32 %v65, 4294901760
    %v211 = vsub.f32 %v65, %v210
    %v212 = vand.u32 %v211, 4294901760
    %v213 = vsub.f32 %v211, %v212
    %v214 = vand.u32 %v213, 4294901760
    %215 = vmatpush.msra.mxu0 %v214
    %v216 = vand.u32 %v63, 4294901760
    %v217 = vsub.f32 %v63, %v216
    %v218 = vand.u32 %v217, 4294901760
    %v219 = vsub.f32 %v217, %v218
    %v220 = vand.u32 %v219, 4294901760
    %221 = vmatpush.msra.mxu0 %v220
    %v222 = vand.u32 %v61, 4294901760
    %v223 = vsub.f32 %v61, %v222
    %v224 = vand.u32 %v223, 4294901760
    %v225 = vsub.f32 %v223, %v224
    %v226 = vand.u32 %v225, 4294901760
    %227 = vmatpush.msra.mxu0 %v226
    %v228 = vand.u32 %v59, 4294901760
    %v229 = vsub.f32 %v59, %v228
    %v230 = vand.u32 %v229, 4294901760
    %v231 = vsub.f32 %v229, %v230
    %v232 = vand.u32 %v231, 4294901760
    %233 = vmatpush.msra.mxu0 %v232
    %v234 = vand.u32 %v58, 4294901760
    %235 = vmatmul.f32.gmra.mxu0 %v234
    %v236 = vpop.f32.mrf.mxu0
    %v237 = vadd.f32 %v136, %v236
    %238 = vdwg.mxu0
    %v239 = vand.u32 %v89, 4294901760
    %v240 = vsub.f32 %v89, %v239
    %241 = vmatpush.msra.mxu0 %v240
    %v242 = vand.u32 %v87, 4294901760
    %v243 = vsub.f32 %v87, %v242
    %244 = vmatpush.msra.mxu0 %v243
    %v245 = vand.u32 %v85, 4294901760
    %v246 = vsub.f32 %v85, %v245
    %247 = vmatpush.msra.mxu0 %v246
    %v248 = vand.u32 %v83, 4294901760
    %v249 = vsub.f32 %v83, %v248
    %250 = vmatpush.msra.mxu0 %v249
    %v251 = vand.u32 %v81, 4294901760
    %v252 = vsub.f32 %v81, %v251
    %253 = vmatpush.msra.mxu0 %v252
    %v254 = vand.u32 %v79, 4294901760
    %v255 = vsub.f32 %v79, %v254
    %256 = vmatpush.msra.mxu0 %v255
    %v257 = vand.u32 %v77, 4294901760
    %v258 = vsub.f32 %v77, %v257
    %259 = vmatpush.msra.mxu0 %v258
    %v260 = vand.u32 %v75, 4294901760
    %v261 = vsub.f32 %v75, %v260
    %262 = vmatpush.msra.mxu0 %v261
    %v263 = vand.u32 %v73, 4294901760
    %v264 = vsub.f32 %v73, %v263
    %265 = vmatpush.msra.mxu0 %v264
    %v266 = vand.u32 %v71, 4294901760
    %v267 = vsub.f32 %v71, %v266
    %268 = vmatpush.msra.mxu0 %v267
    %v269 = vand.u32 %v69, 4294901760
    %v270 = vsub.f32 %v69, %v269
    %271 = vmatpush.msra.mxu0 %v270
    %v272 = vand.u32 %v67, 4294901760
    %v273 = vsub.f32 %v67, %v272
    %274 = vmatpush.msra.mxu0 %v273
    %v275 = vand.u32 %v65, 4294901760
    %v276 = vsub.f32 %v65, %v275
    %277 = vmatpush.msra.mxu0 %v276
    %v278 = vand.u32 %v63, 4294901760
    %v279 = vsub.f32 %v63, %v278
    %280 = vmatpush.msra.mxu0 %v279
    %v281 = vand.u32 %v61, 4294901760
    %v282 = vsub.f32 %v61, %v281
    %283 = vmatpush.msra.mxu0 %v282
    %v284 = vand.u32 %v59, 4294901760
    %v285 = vsub.f32 %v59, %v284
    %286 = vmatpush.msra.mxu0 %v285
    %v287 = vand.u32 %v58, 4294901760
    %v288 = vsub.f32 %v58, %v287
    %289 = vmatmul.f32.gmra.mxu0 %v288
    %v290 = vpop.f32.mrf.mxu0
    %v291 = vadd.f32 %v237, %v290
    %292 = vdwg.mxu0
    %v293 = vand.u32 %v89, 4294901760
    %294 = vmatpush.msra.mxu0 %v293
    %v295 = vand.u32 %v87, 4294901760
    %296 = vmatpush.msra.mxu0 %v295
    %v297 = vand.u32 %v85, 4294901760
    %298 = vmatpush.msra.mxu0 %v297
    %v299 = vand.u32 %v83, 4294901760
    %300 = vmatpush.msra.mxu0 %v299
    %v301 = vand.u32 %v81, 4294901760
    %302 = vmatpush.msra.mxu0 %v301
    %v303 = vand.u32 %v79, 4294901760
    %304 = vmatpush.msra.mxu0 %v303
    %v305 = vand.u32 %v77, 4294901760
    %306 = vmatpush.msra.mxu0 %v305
    %v307 = vand.u32 %v75, 4294901760
    %308 = vmatpush.msra.mxu0 %v307
    %v309 = vand.u32 %v73, 4294901760
    %310 = vmatpush.msra.mxu0 %v309
    %v311 = vand.u32 %v71, 4294901760
    %312 = vmatpush.msra.mxu0 %v311
    %v313 = vand.u32 %v69, 4294901760
    %314 = vmatpush.msra.mxu0 %v313
    %v315 = vand.u32 %v67, 4294901760
    %316 = vmatpush.msra.mxu0 %v315
    %v317 = vand.u32 %v65, 4294901760
    %318 = vmatpush.msra.mxu0 %v317
    %v319 = vand.u32 %v63, 4294901760
    %320 = vmatpush.msra.mxu0 %v319
    %v321 = vand.u32 %v61, 4294901760
    %322 = vmatpush.msra.mxu0 %v321
    %v323 = vand.u32 %v59, 4294901760
    %324 = vmatpush.msra.mxu0 %v323
    %v325 = vand.u32 %v58, 4294901760
    %v326 = vsub.f32 %v58, %v325
    %v327 = vand.u32 %v326, 4294901760
    %328 = vmatmul.f32.gmra.mxu0 %v327
    %v329 = vpop.f32.mrf.mxu0
    %v330 = vadd.f32 %v291, %v329
    %331 = vdwg.mxu0
    %v332 = vand.u32 %v89, 4294901760
    %v333 = vsub.f32 %v89, %v332
    %v334 = vand.u32 %v333, 4294901760
    %335 = vmatpush.msra.mxu0 %v334
    %v336 = vand.u32 %v87, 4294901760
    %v337 = vsub.f32 %v87, %v336
    %v338 = vand.u32 %v337, 4294901760
    %339 = vmatpush.msra.mxu0 %v338
    %v340 = vand.u32 %v85, 4294901760
    %v341 = vsub.f32 %v85, %v340
    %v342 = vand.u32 %v341, 4294901760
    %343 = vmatpush.msra.mxu0 %v342
    %v344 = vand.u32 %v83, 4294901760
    %v345 = vsub.f32 %v83, %v344
    %v346 = vand.u32 %v345, 4294901760
    %347 = vmatpush.msra.mxu0 %v346
    %v348 = vand.u32 %v81, 4294901760
    %v349 = vsub.f32 %v81, %v348
    %v350 = vand.u32 %v349, 4294901760
    %351 = vmatpush.msra.mxu0 %v350
    %v352 = vand.u32 %v79, 4294901760
    %v353 = vsub.f32 %v79, %v352
    %v354 = vand.u32 %v353, 4294901760
    %355 = vmatpush.msra.mxu0 %v354
    %v356 = vand.u32 %v77, 4294901760
    %v357 = vsub.f32 %v77, %v356
    %v358 = vand.u32 %v357, 4294901760
    %359 = vmatpush.msra.mxu0 %v358
    %v360 = vand.u32 %v75, 4294901760
    %v361 = vsub.f32 %v75, %v360
    %v362 = vand.u32 %v361, 4294901760
    %363 = vmatpush.msra.mxu0 %v362
    %v364 = vand.u32 %v73, 4294901760
    %v365 = vsub.f32 %v73, %v364
    %v366 = vand.u32 %v365, 4294901760
    %367 = vmatpush.msra.mxu0 %v366
    %v368 = vand.u32 %v71, 4294901760
    %v369 = vsub.f32 %v71, %v368
    %v370 = vand.u32 %v369, 4294901760
    %371 = vmatpush.msra.mxu0 %v370
    %v372 = vand.u32 %v69, 4294901760
    %v373 = vsub.f32 %v69, %v372
    %v374 = vand.u32 %v373, 4294901760
    %375 = vmatpush.msra.mxu0 %v374
    %v376 = vand.u32 %v67, 4294901760
    %v377 = vsub.f32 %v67, %v376
    %v378 = vand.u32 %v377, 4294901760
    %379 = vmatpush.msra.mxu0 %v378
    %v380 = vand.u32 %v65, 4294901760
    %v381 = vsub.f32 %v65, %v380
    %v382 = vand.u32 %v381, 4294901760
    %383 = vmatpush.msra.mxu0 %v382
    %v384 = vand.u32 %v63, 4294901760
    %v385 = vsub.f32 %v63, %v384
    %v386 = vand.u32 %v385, 4294901760
    %387 = vmatpush.msra.mxu0 %v386
    %v388 = vand.u32 %v61, 4294901760
    %v389 = vsub.f32 %v61, %v388
    %v390 = vand.u32 %v389, 4294901760
    %391 = vmatpush.msra.mxu0 %v390
    %v392 = vand.u32 %v59, 4294901760
    %v393 = vsub.f32 %v59, %v392
    %v394 = vand.u32 %v393, 4294901760
    %395 = vmatpush.msra.mxu0 %v394
    %v396 = vand.u32 %v58, 4294901760
    %397 = vmatmul.f32.gmra.mxu0 %v396
    %v398 = vpop.f32.mrf.mxu0
    %v399 = vadd.f32 %v330, %v398
    %400 = vdwg.mxu0
    %v401 = vand.u32 %v89, 4294901760
    %402 = vmatpush.msra.mxu0 %v401
    %v403 = vand.u32 %v87, 4294901760
    %404 = vmatpush.msra.mxu0 %v403
    %v405 = vand.u32 %v85, 4294901760
    %406 = vmatpush.msra.mxu0 %v405
    %v407 = vand.u32 %v83, 4294901760
    %408 = vmatpush.msra.mxu0 %v407
    %v409 = vand.u32 %v81, 4294901760
    %410 = vmatpush.msra.mxu0 %v409
    %v411 = vand.u32 %v79, 4294901760
    %412 = vmatpush.msra.mxu0 %v411
    %v413 = vand.u32 %v77, 4294901760
    %414 = vmatpush.msra.mxu0 %v413
    %v415 = vand.u32 %v75, 4294901760
    %416 = vmatpush.msra.mxu0 %v415
    %v417 = vand.u32 %v73, 4294901760
    %418 = vmatpush.msra.mxu0 %v417
    %v419 = vand.u32 %v71, 4294901760
    %420 = vmatpush.msra.mxu0 %v419
    %v421 = vand.u32 %v69, 4294901760
    %422 = vmatpush.msra.mxu0 %v421
    %v423 = vand.u32 %v67, 4294901760
    %424 = vmatpush.msra.mxu0 %v423
    %v425 = vand.u32 %v65, 4294901760
    %426 = vmatpush.msra.mxu0 %v425
    %v427 = vand.u32 %v63, 4294901760
    %428 = vmatpush.msra.mxu0 %v427
    %v429 = vand.u32 %v61, 4294901760
    %430 = vmatpush.msra.mxu0 %v429
    %v431 = vand.u32 %v59, 4294901760
    %432 = vmatpush.msra.mxu0 %v431
    %v433 = vand.u32 %v58, 4294901760
    %434 = vmatmul.f32.gmra.mxu0 %v433
    %v435 = vpop.f32.mrf.mxu0
    %v436 = vadd.f32 %v399, %v435
    %437 = vdwg.mxu0
    %v438 = vand.u32 %v90, 4294901760
    %439 = vmatpush.msra.mxu0 %v438
    %v440 = vand.u32 %v88, 4294901760
    %441 = vmatpush.msra.mxu0 %v440
    %v442 = vand.u32 %v86, 4294901760
    %443 = vmatpush.msra.mxu0 %v442
    %v444 = vand.u32 %v84, 4294901760
    %445 = vmatpush.msra.mxu0 %v444
    %v446 = vand.u32 %v82, 4294901760
    %447 = vmatpush.msra.mxu0 %v446
    %v448 = vand.u32 %v80, 4294901760
    %449 = vmatpush.msra.mxu0 %v448
    %v450 = vand.u32 %v78, 4294901760
    %451 = vmatpush.msra.mxu0 %v450
    %v452 = vand.u32 %v76, 4294901760
    %453 = vmatpush.msra.mxu0 %v452
    %v454 = vand.u32 %v74, 4294901760
    %455 = vmatpush.msra.mxu0 %v454
    %v456 = vand.u32 %v72, 4294901760
    %457 = vmatpush.msra.mxu0 %v456
    %v458 = vand.u32 %v70, 4294901760
    %459 = vmatpush.msra.mxu0 %v458
    %v460 = vand.u32 %v68, 4294901760
    %461 = vmatpush.msra.mxu0 %v460
    %v462 = vand.u32 %v66, 4294901760
    %463 = vmatpush.msra.mxu0 %v462
    %v464 = vand.u32 %v64, 4294901760
    %465 = vmatpush.msra.mxu0 %v464
    %v466 = vand.u32 %v62, 4294901760
    %467 = vmatpush.msra.mxu0 %v466
    %v468 = vand.u32 %v60, 4294901760
    %469 = vmatpush.msra.mxu0 %v468
    %v470 = vand.u32 %v58, 4294901760
    %v471 = vsub.f32 %v58, %v470
    %v472 = vand.u32 %v471, 4294901760
    %v473 = vsub.f32 %v471, %v472
    %v474 = vand.u32 %v473, 4294901760
    %475 = vmatmul.f32.gmra.mxu0 %v474
    %v476 = vpop.f32.mrf.mxu0
    %v477 = vadd.f32 %v94, %v476
    %478 = vdwg.mxu0
    %v479 = vand.u32 %v90, 4294901760
    %v480 = vsub.f32 %v90, %v479
    %v481 = vand.u32 %v480, 4294901760
    %v482 = vsub.f32 %v480, %v481
    %v483 = vand.u32 %v482, 4294901760
    %484 = vmatpush.msra.mxu0 %v483
    %v485 = vand.u32 %v88, 4294901760
    %v486 = vsub.f32 %v88, %v485
    %v487 = vand.u32 %v486, 4294901760
    %v488 = vsub.f32 %v486, %v487
    %v489 = vand.u32 %v488, 4294901760
    %490 = vmatpush.msra.mxu0 %v489
    %v491 = vand.u32 %v86, 4294901760
    %v492 = vsub.f32 %v86, %v491
    %v493 = vand.u32 %v492, 4294901760
    %v494 = vsub.f32 %v492, %v493
    %v495 = vand.u32 %v494, 4294901760
    %496 = vmatpush.msra.mxu0 %v495
    %v497 = vand.u32 %v84, 4294901760
    %v498 = vsub.f32 %v84, %v497
    %v499 = vand.u32 %v498, 4294901760
    %v500 = vsub.f32 %v498, %v499
    %v501 = vand.u32 %v500, 4294901760
    %502 = vmatpush.msra.mxu0 %v501
    %v503 = vand.u32 %v82, 4294901760
    %v504 = vsub.f32 %v82, %v503
    %v505 = vand.u32 %v504, 4294901760
    %v506 = vsub.f32 %v504, %v505
    %v507 = vand.u32 %v506, 4294901760
    %508 = vmatpush.msra.mxu0 %v507
    %v509 = vand.u32 %v80, 4294901760
    %v510 = vsub.f32 %v80, %v509
    %v511 = vand.u32 %v510, 4294901760
    %v512 = vsub.f32 %v510, %v511
    %v513 = vand.u32 %v512, 4294901760
    %514 = vmatpush.msra.mxu0 %v513
    %v515 = vand.u32 %v78, 4294901760
    %v516 = vsub.f32 %v78, %v515
    %v517 = vand.u32 %v516, 4294901760
    %v518 = vsub.f32 %v516, %v517
    %v519 = vand.u32 %v518, 4294901760
    %520 = vmatpush.msra.mxu0 %v519
    %v521 = vand.u32 %v76, 4294901760
    %v522 = vsub.f32 %v76, %v521
    %v523 = vand.u32 %v522, 4294901760
    %v524 = vsub.f32 %v522, %v523
    %v525 = vand.u32 %v524, 4294901760
    %526 = vmatpush.msra.mxu0 %v525
    %v527 = vand.u32 %v74, 4294901760
    %v528 = vsub.f32 %v74, %v527
    %v529 = vand.u32 %v528, 4294901760
    %v530 = vsub.f32 %v528, %v529
    %v531 = vand.u32 %v530, 4294901760
    %532 = vmatpush.msra.mxu0 %v531
    %v533 = vand.u32 %v72, 4294901760
    %v534 = vsub.f32 %v72, %v533
    %v535 = vand.u32 %v534, 4294901760
    %v536 = vsub.f32 %v534, %v535
    %v537 = vand.u32 %v536, 4294901760
    %538 = vmatpush.msra.mxu0 %v537
    %v539 = vand.u32 %v70, 4294901760
    %v540 = vsub.f32 %v70, %v539
    %v541 = vand.u32 %v540, 4294901760
    %v542 = vsub.f32 %v540, %v541
    %v543 = vand.u32 %v542, 4294901760
    %544 = vmatpush.msra.mxu0 %v543
    %v545 = vand.u32 %v68, 4294901760
    %v546 = vsub.f32 %v68, %v545
    %v547 = vand.u32 %v546, 4294901760
    %v548 = vsub.f32 %v546, %v547
    %v549 = vand.u32 %v548, 4294901760
    %550 = vmatpush.msra.mxu0 %v549
    %v551 = vand.u32 %v66, 4294901760
    %v552 = vsub.f32 %v66, %v551
    %v553 = vand.u32 %v552, 4294901760
    %v554 = vsub.f32 %v552, %v553
    %v555 = vand.u32 %v554, 4294901760
    %556 = vmatpush.msra.mxu0 %v555
    %v557 = vand.u32 %v64, 4294901760
    %v558 = vsub.f32 %v64, %v557
    %v559 = vand.u32 %v558, 4294901760
    %v560 = vsub.f32 %v558, %v559
    %v561 = vand.u32 %v560, 4294901760
    %562 = vmatpush.msra.mxu0 %v561
    %v563 = vand.u32 %v62, 4294901760
    %v564 = vsub.f32 %v62, %v563
    %v565 = vand.u32 %v564, 4294901760
    %v566 = vsub.f32 %v564, %v565
    %v567 = vand.u32 %v566, 4294901760
    %568 = vmatpush.msra.mxu0 %v567
    %v569 = vand.u32 %v60, 4294901760
    %v570 = vsub.f32 %v60, %v569
    %v571 = vand.u32 %v570, 4294901760
    %v572 = vsub.f32 %v570, %v571
    %v573 = vand.u32 %v572, 4294901760
    %574 = vmatpush.msra.mxu0 %v573
    %v575 = vand.u32 %v58, 4294901760
    %576 = vmatmul.f32.gmra.mxu0 %v575
    %v577 = vpop.f32.mrf.mxu0
    %v578 = vadd.f32 %v477, %v577
    %579 = vdwg.mxu0
    %v580 = vand.u32 %v90, 4294901760
    %v581 = vsub.f32 %v90, %v580
    %582 = vmatpush.msra.mxu0 %v581
    %v583 = vand.u32 %v88, 4294901760
    %v584 = vsub.f32 %v88, %v583
    %585 = vmatpush.msra.mxu0 %v584
    %v586 = vand.u32 %v86, 4294901760
    %v587 = vsub.f32 %v86, %v586
    %588 = vmatpush.msra.mxu0 %v587
    %v589 = vand.u32 %v84, 4294901760
    %v590 = vsub.f32 %v84, %v589
    %591 = vmatpush.msra.mxu0 %v590
    %v592 = vand.u32 %v82, 4294901760
    %v593 = vsub.f32 %v82, %v592
    %594 = vmatpush.msra.mxu0 %v593
    %v595 = vand.u32 %v80, 4294901760
    %v596 = vsub.f32 %v80, %v595
    %597 = vmatpush.msra.mxu0 %v596
    %v598 = vand.u32 %v78, 4294901760
    %v599 = vsub.f32 %v78, %v598
    %600 = vmatpush.msra.mxu0 %v599
    %v601 = vand.u32 %v76, 4294901760
    %v602 = vsub.f32 %v76, %v601
    %603 = vmatpush.msra.mxu0 %v602
    %v604 = vand.u32 %v74, 4294901760
    %v605 = vsub.f32 %v74, %v604
    %606 = vmatpush.msra.mxu0 %v605
    %v607 = vand.u32 %v72, 4294901760
    %v608 = vsub.f32 %v72, %v607
    %609 = vmatpush.msra.mxu0 %v608
    %v610 = vand.u32 %v70, 4294901760
    %v611 = vsub.f32 %v70, %v610
    %612 = vmatpush.msra.mxu0 %v611
    %v613 = vand.u32 %v68, 4294901760
    %v614 = vsub.f32 %v68, %v613
    %615 = vmatpush.msra.mxu0 %v614
    %v616 = vand.u32 %v66, 4294901760
    %v617 = vsub.f32 %v66, %v616
    %618 = vmatpush.msra.mxu0 %v617
    %v619 = vand.u32 %v64, 4294901760
    %v620 = vsub.f32 %v64, %v619
    %621 = vmatpush.msra.mxu0 %v620
    %v622 = vand.u32 %v62, 4294901760
    %v623 = vsub.f32 %v62, %v622
    %624 = vmatpush.msra.mxu0 %v623
    %v625 = vand.u32 %v60, 4294901760
    %v626 = vsub.f32 %v60, %v625
    %627 = vmatpush.msra.mxu0 %v626
    %v628 = vand.u32 %v58, 4294901760
    %v629 = vsub.f32 %v58, %v628
    %630 = vmatmul.f32.gmra.mxu0 %v629
    %v631 = vpop.f32.mrf.mxu0
    %v632 = vadd.f32 %v578, %v631
    %633 = vdwg.mxu0
    %v634 = vand.u32 %v90, 4294901760
    %635 = vmatpush.msra.mxu0 %v634
    %v636 = vand.u32 %v88, 4294901760
    %637 = vmatpush.msra.mxu0 %v636
    %v638 = vand.u32 %v86, 4294901760
    %639 = vmatpush.msra.mxu0 %v638
    %v640 = vand.u32 %v84, 4294901760
    %641 = vmatpush.msra.mxu0 %v640
    %v642 = vand.u32 %v82, 4294901760
    %643 = vmatpush.msra.mxu0 %v642
    %v644 = vand.u32 %v80, 4294901760
    %645 = vmatpush.msra.mxu0 %v644
    %v646 = vand.u32 %v78, 4294901760
    %647 = vmatpush.msra.mxu0 %v646
    %v648 = vand.u32 %v76, 4294901760
    %649 = vmatpush.msra.mxu0 %v648
    %v650 = vand.u32 %v74, 4294901760
    %651 = vmatpush.msra.mxu0 %v650
    %v652 = vand.u32 %v72, 4294901760
    %653 = vmatpush.msra.mxu0 %v652
    %v654 = vand.u32 %v70, 4294901760
    %655 = vmatpush.msra.mxu0 %v654
    %v656 = vand.u32 %v68, 4294901760
    %657 = vmatpush.msra.mxu0 %v656
    %v658 = vand.u32 %v66, 4294901760
    %659 = vmatpush.msra.mxu0 %v658
    %v660 = vand.u32 %v64, 4294901760
    %661 = vmatpush.msra.mxu0 %v660
    %v662 = vand.u32 %v62, 4294901760
    %663 = vmatpush.msra.mxu0 %v662
    %v664 = vand.u32 %v60, 4294901760
    %665 = vmatpush.msra.mxu0 %v664
    %v666 = vand.u32 %v58, 4294901760
    %v667 = vsub.f32 %v58, %v666
    %v668 = vand.u32 %v667, 4294901760
    %669 = vmatmul.f32.gmra.mxu0 %v668
    %v670 = vpop.f32.mrf.mxu0
    %v671 = vadd.f32 %v632, %v670
    %672 = vdwg.mxu0
    %v673 = vand.u32 %v90, 4294901760
    %v674 = vsub.f32 %v90, %v673
    %v675 = vand.u32 %v674, 4294901760
    %676 = vmatpush.msra.mxu0 %v675
    %v677 = vand.u32 %v88, 4294901760
    %v678 = vsub.f32 %v88, %v677
    %v679 = vand.u32 %v678, 4294901760
    %680 = vmatpush.msra.mxu0 %v679
    %v681 = vand.u32 %v86, 4294901760
    %v682 = vsub.f32 %v86, %v681
    %v683 = vand.u32 %v682, 4294901760
    %684 = vmatpush.msra.mxu0 %v683
    %v685 = vand.u32 %v84, 4294901760
    %v686 = vsub.f32 %v84, %v685
    %v687 = vand.u32 %v686, 4294901760
    %688 = vmatpush.msra.mxu0 %v687
    %v689 = vand.u32 %v82, 4294901760
    %v690 = vsub.f32 %v82, %v689
    %v691 = vand.u32 %v690, 4294901760
    %692 = vmatpush.msra.mxu0 %v691
    %v693 = vand.u32 %v80, 4294901760
    %v694 = vsub.f32 %v80, %v693
    %v695 = vand.u32 %v694, 4294901760
    %696 = vmatpush.msra.mxu0 %v695
    %v697 = vand.u32 %v78, 4294901760
    %v698 = vsub.f32 %v78, %v697
    %v699 = vand.u32 %v698, 4294901760
    %700 = vmatpush.msra.mxu0 %v699
    %v701 = vand.u32 %v76, 4294901760
    %v702 = vsub.f32 %v76, %v701
    %v703 = vand.u32 %v702, 4294901760
    %704 = vmatpush.msra.mxu0 %v703
    %v705 = vand.u32 %v74, 4294901760
    %v706 = vsub.f32 %v74, %v705
    %v707 = vand.u32 %v706, 4294901760
    %708 = vmatpush.msra.mxu0 %v707
    %v709 = vand.u32 %v72, 4294901760
    %v710 = vsub.f32 %v72, %v709
    %v711 = vand.u32 %v710, 4294901760
    %712 = vmatpush.msra.mxu0 %v711
    %v713 = vand.u32 %v70, 4294901760
    %v714 = vsub.f32 %v70, %v713
    %v715 = vand.u32 %v714, 4294901760
    %716 = vmatpush.msra.mxu0 %v715
    %v717 = vand.u32 %v68, 4294901760
    %v718 = vsub.f32 %v68, %v717
    %v719 = vand.u32 %v718, 4294901760
    %720 = vmatpush.msra.mxu0 %v719
    %v721 = vand.u32 %v66, 4294901760
    %v722 = vsub.f32 %v66, %v721
    %v723 = vand.u32 %v722, 4294901760
    %724 = vmatpush.msra.mxu0 %v723
    %v725 = vand.u32 %v64, 4294901760
    %v726 = vsub.f32 %v64, %v725
    %v727 = vand.u32 %v726, 4294901760
    %728 = vmatpush.msra.mxu0 %v727
    %v729 = vand.u32 %v62, 4294901760
    %v730 = vsub.f32 %v62, %v729
    %v731 = vand.u32 %v730, 4294901760
    %732 = vmatpush.msra.mxu0 %v731
    %v733 = vand.u32 %v60, 4294901760
    %v734 = vsub.f32 %v60, %v733
    %v735 = vand.u32 %v734, 4294901760
    %736 = vmatpush.msra.mxu0 %v735
    %v737 = vand.u32 %v58, 4294901760
    %738 = vmatmul.f32.gmra.mxu0 %v737
    %v739 = vpop.f32.mrf.mxu0
    %v740 = vadd.f32 %v671, %v739
    %741 = vdwg.mxu0
    %v742 = vand.u32 %v90, 4294901760
    %743 = vmatpush.msra.mxu0 %v742
    %v744 = vand.u32 %v88, 4294901760
    %745 = vmatpush.msra.mxu0 %v744
    %v746 = vand.u32 %v86, 4294901760
    %747 = vmatpush.msra.mxu0 %v746
    %v748 = vand.u32 %v84, 4294901760
    %749 = vmatpush.msra.mxu0 %v748
    %v750 = vand.u32 %v82, 4294901760
    %751 = vmatpush.msra.mxu0 %v750
    %v752 = vand.u32 %v80, 4294901760
    %753 = vmatpush.msra.mxu0 %v752
    %v754 = vand.u32 %v78, 4294901760
    %755 = vmatpush.msra.mxu0 %v754
    %v756 = vand.u32 %v76, 4294901760
    %757 = vmatpush.msra.mxu0 %v756
    %v758 = vand.u32 %v74, 4294901760
    %759 = vmatpush.msra.mxu0 %v758
    %v760 = vand.u32 %v72, 4294901760
    %761 = vmatpush.msra.mxu0 %v760
    %v762 = vand.u32 %v70, 4294901760
    %763 = vmatpush.msra.mxu0 %v762
    %v764 = vand.u32 %v68, 4294901760
    %765 = vmatpush.msra.mxu0 %v764
    %v766 = vand.u32 %v66, 4294901760
    %767 = vmatpush.msra.mxu0 %v766
    %v768 = vand.u32 %v64, 4294901760
    %769 = vmatpush.msra.mxu0 %v768
    %v770 = vand.u32 %v62, 4294901760
    %771 = vmatpush.msra.mxu0 %v770
    %v772 = vand.u32 %v60, 4294901760
    %773 = vmatpush.msra.mxu0 %v772
    %v774 = vand.u32 %v58, 4294901760
    %775 = vmatmul.f32.gmra.mxu0 %v774
    %v776 = vpop.f32.mrf.mxu0
    %v777 = vadd.f32 %v740, %v776
    %778 = vdwg.mxu0
    %779 = vst [vmem:[#allocation8] sm:$0xff] %v436
    %780 = vst [vmem:[#allocation8 + $0x8] sm:$0xff] %v777
    // Predicated region
    $region26: #{tpu_custom_call.1} parent=1 // pred_check
      _
    $region27: #{tpu_custom_call.1} parent=1 // pred_check_branch
      %782 = sbr.rel (0) target = $region29
    $region28: #{tpu_custom_call.1} parent=1 // pred_region
      %784 = vsyncadd [#allocation4], 0
      %s786 = sshll.u32 [#allocation8], 4
      %s787 = int_to_ptr.vmem [resolvable:$true] %s786
      %s788 = sshll.u32 %s3, 4
      %s789 = int_to_ptr.hbm [resolvable:$true] %s788
      %791 = dma.vmem_to_hbm [thread:$0]  %s787, 256, %s789, [#allocation4]
    $region29: #{tpu_custom_call.1} parent=1 // pred_fallthru
      _
    // Predicated region
    $region30: #{tpu_custom_call.1} parent=1 // pred_check
      _
    $region31: #{tpu_custom_call.1} parent=1 // pred_check_branch
      %793 = sbr.rel (0) target = $region33
    $region32: #{tpu_custom_call.1} parent=1 // pred_region
      %795 = dma.done [#allocation4], 256
    $region33: #{tpu_custom_call.1} parent=1 // pred_fallthru
      _
    %796 = vsyncpa [#allocation3], 1
    %797 = vsyncpa [#allocation6], 1
    %798 = vsyncpa [#allocation4], 1

</llo_original>
